<compile_context>
chip_gen: v6e
topology: v6e:2x2x1
jax: 0.10.0
libtpu: 0.0.40
codegen_flags: <defaults>
</compile_context>

<pallas_src>
import functools
import math

import jax
import jax.numpy as jnp
from jax.experimental import pallas as pl
from jax.experimental.pallas import tpu as pltpu


# ------------------------------ kernels -------------------------------------


def _soft_margin_softmax_kernel(x_ref, o_ref, *, margin):
    """Single-pass kernel: full class axis (C) resident per row block."""
    k = math.exp(-margin)                             # compile-time constant
    x = x_ref[...]                                    # (tile_n, C) f32
    # Exact stabilization: numerator & denominator both scaled by exp(-rowmax).
    row_max = jnp.max(x, axis=-1, keepdims=True)      # XLU lane reduce
    e = jnp.exp(x - row_max)                          # one EUP exp / element
    row_sum = jnp.sum(e, axis=-1, keepdims=True)      # XLU lane reduce
    # out = ex_m / (ex_m + sum(ex) - ex) == (k*e) / (sum(e) + e*(k - 1))
    o_ref[...] = (e * k) / (row_sum + e * (k - 1.0))


def _row_stats_kernel(x_ref, max_ref, sum_ref, m_sc, s_sc):
    """Wide-C pass 1: online rowmax and rescaled rowsum over C tiles."""
    kc = pl.program_id(1)

    @pl.when(kc == 0)
    def _():
        m_sc[...] = jnp.full_like(m_sc, -jnp.inf)
        s_sc[...] = jnp.zeros_like(s_sc)

    x = x_ref[...]                                    # (tile_n, tile_c)
    m_new = jnp.maximum(m_sc[...], jnp.max(x, axis=-1, keepdims=True))
    s_sc[...] = (s_sc[...] * jnp.exp(m_sc[...] - m_new)
                 + jnp.sum(jnp.exp(x - m_new), axis=-1, keepdims=True))
    m_sc[...] = m_new

    @pl.when(kc == pl.num_programs(1) - 1)
    def _():
        max_ref[...] = m_sc[...]
        sum_ref[...] = s_sc[...]


def _normalize_kernel(x_ref, max_ref, sum_ref, o_ref, *, margin):
    """Wide-C pass 2: elementwise normalize using the row stats."""
    k = math.exp(-margin)
    e = jnp.exp(x_ref[...] - max_ref[...])            # exp(x - rowmax)
    o_ref[...] = (e * k) / (sum_ref[...] + e * (k - 1.0))


# ------------------------------ wrapper --------------------------------------


def _round_up(x: int, m: int) -> int:
    return -(-x // m) * m


def _vmem_budget_bytes() -> int:
    """VMEM budget with headroom: ~40 MiB on 64 MiB v7x, ~64 MiB on 128 MiB parts."""
    try:
        cap = int(pltpu.get_tpu_info().vmem_capacity_bytes)
    except Exception:  # pragma: no cover - conservative fallback
        cap = 128 << 20
    return min(int(cap * 0.625), 64 << 20)


def _choose_tile_n(N: int, row_bytes: int, max_tile_bytes: int,
                   max_tile_n: int = 2048) -> int:
    """Largest row tile (multiple of 8) in budget; favors an even block count
    so v7x's two TensorCores get an even split of the ("parallel",) row axis."""
    if N <= 8:
        return N
    tile_n = max(8, (max_tile_bytes // row_bytes) // 8 * 8)
    tile_n = min(tile_n, max_tile_n)
    n_blocks = pl.cdiv(N, tile_n)
    if n_blocks == 1:
        tile_n = max(8, _round_up(_round_up(N, 2) // 2, 8))   # split into 2 blocks
    elif n_blocks % 2 == 1:
        alt = max(8, _round_up(-(-N // (n_blocks + 1)), 8))
        if pl.cdiv(N, alt) % 2 == 0:
            tile_n = alt
    return tile_n


def soft_margin_softmax(x: jax.Array, margin: float, *,
                        tile_n: int | None = None,
                        tile_c: int | None = None,
                        force_two_pass: bool = False) -> jax.Array:
    """SoftMarginSoftmax forward for x of shape (N, C); softmax axis = last axis."""
    N, C = x.shape
    itemsize = jnp.dtype(x.dtype).itemsize
    budget = _vmem_budget_bytes()
    # in + out, each double-buffered -> ~4 live big tiles, plus headroom.
    max_tile_bytes = max(budget // 5, 1 << 20)
    neg_fill = float(jnp.finfo(x.dtype).min)   # exp(fill - rowmax) == 0 -> inert padding

    two_pass = force_two_pass or (8 * _round_up(C, 128) * itemsize > max_tile_bytes)

    if not two_pass:
        # ---------------- single-pass path (full C per row block) ------------
        c_pad = _round_up(C, 128)               # lane-dense stores
        xp = x if c_pad == C else jnp.pad(
            x, ((0, 0), (0, c_pad - C)), constant_values=neg_fill)
        tn = tile_n if tile_n is not None else _choose_tile_n(
            N, c_pad * itemsize, max_tile_bytes)
        grid = (pl.cdiv(N, tn),)                # trailing partial block padded by Pallas

        kernel = functools.partial(_soft_margin_softmax_kernel, margin=margin)
        cost = pl.CostEstimate(
            flops=7 * N * c_pad,                # max, sub, mul, add, mul, add, div (approx.)
            transcendentals=N * c_pad,          # one exp per element
            bytes_accessed=2 * N * c_pad * itemsize,
        )
        out = pl.pallas_call(
            kernel,
            out_shape=jax.ShapeDtypeStruct((N, c_pad), x.dtype),
            grid_spec=pltpu.PrefetchScalarGridSpec(
                num_scalar_prefetch=0,
                grid=grid,
                in_specs=[pl.BlockSpec((tn, c_pad), lambda i: (i, 0))],
                out_specs=pl.BlockSpec((tn, c_pad), lambda i: (i, 0)),
            ),
            compiler_params=pltpu.CompilerParams(
                dimension_semantics=("parallel",),
                vmem_limit_bytes=budget,
            ),
            cost_estimate=cost,
        )(xp)
        return out if c_pad == C else out[:, :C]

    # ---------------- wide-C path: 2-pass, C tiled on the grid ----------------
    if tile_c is None:
        tile_c = min(_round_up(C, 128), 2048)
    tile_c = _round_up(tile_c, 128)
    c_pad = _round_up(C, tile_c)
    xp = x if c_pad == C else jnp.pad(
        x, ((0, 0), (0, c_pad - C)), constant_values=neg_fill)
    tn = tile_n if tile_n is not None else _choose_tile_n(
        N, tile_c * itemsize, max_tile_bytes)
    grid = (pl.cdiv(N, tn), c_pad // tile_c)

    stats_shape = jax.ShapeDtypeStruct((N, 1), jnp.float32)
    row_max, row_sum = pl.pallas_call(
        _row_stats_kernel,
        out_shape=(stats_shape, stats_shape),
        grid_spec=pltpu.PrefetchScalarGridSpec(
            num_scalar_prefetch=0,
            grid=grid,
            in_specs=[pl.BlockSpec((tn, tile_c), lambda i, kc: (i, kc))],
            out_specs=(pl.BlockSpec((tn, 1), lambda i, kc: (i, 0)),
                       pl.BlockSpec((tn, 1), lambda i, kc: (i, 0))),
            scratch_shapes=[pltpu.VMEM((tn, 1), jnp.float32),
                            pltpu.VMEM((tn, 1), jnp.float32)],
        ),
        compiler_params=pltpu.CompilerParams(
            dimension_semantics=("parallel", "arbitrary"),
            vmem_limit_bytes=budget,
        ),
    )(xp)

    out = pl.pallas_call(
        functools.partial(_normalize_kernel, margin=margin),
        out_shape=jax.ShapeDtypeStruct((N, c_pad), x.dtype),
        grid_spec=pltpu.PrefetchScalarGridSpec(
            num_scalar_prefetch=0,
            grid=grid,
            in_specs=[pl.BlockSpec((tn, tile_c), lambda i, kc: (i, kc)),
                      pl.BlockSpec((tn, 1), lambda i, kc: (i, 0)),
                      pl.BlockSpec((tn, 1), lambda i, kc: (i, 0))],
            out_specs=pl.BlockSpec((tn, tile_c), lambda i, kc: (i, kc)),
        ),
        compiler_params=pltpu.CompilerParams(
            dimension_semantics=("parallel", "parallel"),
            vmem_limit_bytes=budget,
        ),
    )(xp, row_max, row_sum)
    return out if c_pad == C else out[:, :C]


# ------------------------------ reference & test -----------------------------


def _reference(x: jax.Array, margin: float) -> jax.Array:
    ex = jnp.exp(x)
    ex_m = jnp.exp(x - margin)
    norm = jnp.sum(ex, axis=-1, keepdims=True) - ex
    return ex_m / (ex_m + norm)


if __name__ == "__main__":
    key = jax.random.PRNGKey(0)
    margin = 0.5  # module __init__ hyperparameter
    k1, k2, k3, k4 = jax.random.split(key, 4)

    # 1) Small, lane-aligned shape: 16 rows (batch), 128 classes.
    x1 = jax.random.normal(k1, (16, 128), dtype=jnp.float32)
    out1 = jax.block_until_ready(soft_margin_softmax(x1, margin))
    assert out1.shape == x1.shape and out1.dtype == jnp.float32
    assert jnp.allclose(out1, _reference(x1, margin), atol=1e-5, rtol=1e-5), "16x128"

    # 2) Multi-block grid path.
    x2 = jax.random.normal(k2, (48, 256), dtype=jnp.float32) * 3.0
    out2 = jax.block_until_ready(soft_margin_softmax(x2, margin))
    assert jnp.allclose(out2, _reference(x2, margin), atol=1e-5, rtol=1e-5), "48x256"

    # 3) Non-divisible N and non-128-aligned C: padded edge row block + lane
    #    padding of C (padded columns sliced away).
    x3 = jax.random.normal(k3, (50, 200), dtype=jnp.float32)
    out3 = jax.block_until_ready(soft_margin_softmax(x3, margin))
    assert out3.shape == x3.shape
    assert jnp.allclose(out3, _reference(x3, margin), atol=1e-5, rtol=1e-5), "50x200"

    # 4) Wide-C (two-pass, online row stats) path, forced on a small shape.
    x4 = jax.random.normal(k4, (24, 300), dtype=jnp.float32) * 2.0
    out4 = jax.block_until_ready(
        soft_margin_softmax(x4, margin, force_two_pass=True, tile_c=128))
    assert out4.shape == x4.shape
    assert jnp.allclose(out4, _reference(x4, margin), atol=1e-5, rtol=1e-5), "24x300 two-pass"

    print("KERNEL_OK")
</pallas_src>

<mosaic_0001>
module attributes {stable_mosaic.version = 11 : i64} {
  func.func @_soft_margin_softmax_kernel(%arg0: i32, %arg1: memref<8x128xf32, #tpu.memory_space<vmem>>, %arg2: memref<8x128xf32, #tpu.memory_space<vmem>>) attributes {dimension_semantics = [#tpu.dimension_semantics<parallel>], iteration_bounds = array<i64: 2>, scalar_prefetch = 0 : i64, scratch_operands = 0 : i64, tpu.core_type = #tpu.core_type<tc>, window_params = [{transform_indices = @transform_0, window_bounds = array<i64: 8, 128>}, {transform_indices = @transform_1, window_bounds = array<i64: 8, 128>}]} {
    %c0 = arith.constant 0 : index
    %c0_0 = arith.constant 0 : index
    %0 = vector.load %arg1[%c0, %c0_0] : memref<8x128xf32, #tpu.memory_space<vmem>>, vector<8x128xf32>
    %cst = arith.constant dense<0xFF800000> : vector<8xf32>
    %1 = vector.multi_reduction <maximumf>, %0, %cst [1] : vector<8x128xf32> to vector<8xf32>
    %2 = vector.shape_cast %1 : vector<8xf32> to vector<8x1xf32>
    %3 = vector.broadcast %2 : vector<8x1xf32> to vector<8x128xf32>
    %4 = arith.subf %0, %3 : vector<8x128xf32>
    %5 = math.exp %4 : vector<8x128xf32>
    %cst_1 = arith.constant dense<0.000000e+00> : vector<8xf32>
    %6 = vector.multi_reduction <add>, %5, %cst_1 [1] : vector<8x128xf32> to vector<8xf32>
    %7 = vector.shape_cast %6 : vector<8xf32> to vector<8x1xf32>
    %cst_2 = arith.constant 0.606530666 : f32
    %8 = vector.broadcast %cst_2 : f32 to vector<8x128xf32>
    %9 = arith.mulf %5, %8 : vector<8x128xf32>
    %cst_3 = arith.constant -0.393469334 : f32
    %10 = vector.broadcast %cst_3 : f32 to vector<8x128xf32>
    %11 = arith.mulf %5, %10 : vector<8x128xf32>
    %12 = vector.broadcast %7 : vector<8x1xf32> to vector<8x128xf32>
    %13 = arith.addf %12, %11 : vector<8x128xf32>
    %14 = arith.divf %9, %13 : vector<8x128xf32>
    %c0_4 = arith.constant 0 : index
    %c0_5 = arith.constant 0 : index
    %15 = vector.load %arg2[%c0_4, %c0_5] : memref<8x128xf32, #tpu.memory_space<vmem>>, vector<8x128xf32>
    tpu.vector_store %arg2[%c0_4, %c0_5], %14 {strides = array<i32>} : memref<8x128xf32, #tpu.memory_space<vmem>>, vector<8x128xf32>,
    return
  }
  func.func @transform_0(%arg0: i32) -> (i32, i32) {
    %c0_i32 = arith.constant 0 : i32
    %c0_i32_0 = arith.constant 0 : i32
    return %arg0, %c0_i32 : i32, i32
  }
  func.func @transform_1(%arg0: i32) -> (i32, i32) {
    %c0_i32 = arith.constant 0 : i32
    %c0_i32_0 = arith.constant 0 : i32
    return %arg0, %c0_i32 : i32, i32
  }
}

</mosaic_0001>

<llo_original>
// kernel: tpu_custom_call.1
$region0: #{tpu_custom_call.1}
  #allocation0 [shape = 'u32[]', space=smem, size = 0x4, offset = 0x4, fixed_abs, tag = 'smem constant byte address 0x4 - core index']
  #allocation1 [shape = 'u32[144,128]{1,0:T(1,128)}', space=vmem, size = 0x12000, scoped, tag = 'internal scratch']
  %s0 = inlined_call_operand.hbm [shape: f32[16,128], index: 0, kind: input, shape index: {}]
  %s1 = inlined_call_operand.hbm [shape: f32[16,128], index: 1, kind: output, shape index: {}]
  %s2 = sld [smem:[#allocation0]]
  $region41: #{tpu_custom_call.1} parent=0
    _
  %s4 = ssub.s32 1, %s2
  %s5 = scalar_select 0, %s4, %s2
  $region1: #{tpu_custom_call.1} parent=0
    #allocation2 [shape = 'u8[8192]{0}', space=vmem, size = 0x2000, scoped, tag = 'input window, operand 0']
    #allocation3 [shape = 's32[2]{0}', space=sflag, size = 0x8, scoped, tag = 'scoped memory for tpu_custom_call.1']
    #allocation4 [shape = 's32[2]{0}', space=sflag, size = 0x8, scoped, tag = 'scoped memory for tpu_custom_call.1']
    #allocation5 [shape = 'u8[8192]{0}', space=vmem, size = 0x2000, scoped, tag = 'output window, operand 0']
    %6 = vsyncpa [#allocation3], 0
    %s7 = scalar_lea.sflag [#allocation3], 1
    %8 = vsyncpa %s7, 0
    %9 = vsyncpa [#allocation4], 0
    %s10 = scalar_lea.sflag [#allocation4], 1
    %11 = vsyncpa %s10, 0
    loop: start=0, step=1, limit=4
    $region2: #{tpu_custom_call.1} parent=1 // loop_pre_header
      _
    $region3: #{tpu_custom_call.1} parent=1 // loop_header
      %s13 = sphi 0, %s17
      %p14 = scmp.ge.s32.totalorder %s13, 4
      %s23 = sphi 0, %s25
      %s26 = sphi 0, %s23
      %s27 = sphi 0, %s26
      %s43 = sphi 0, %s27
      %s49 = sphi 0, %s51
      %s52 = sphi 0, %s49
      %s53 = sphi 0, %s52
      %s69 = sphi 0, %s53
    $region4: #{tpu_custom_call.1} parent=1 // loop_header_branch
      %16 = sbr.rel (%p14) target = $region8
    $region5: #{tpu_custom_call.1} parent=1 // loop_body
      %s18 = ssub.s32 %s13, 1
      %s19 = ssub.s32 %s13, 2
      %s20 = sadd.s32 %s13, 1
      %s21 = ssub.s32 %s13, %s20
      %p22 = scmp.eq.s32.totalorder %s21, 0
      %s24 = sadd.s32 %s23, 1
      %s25 = scalar_select %p22, %s23, %s24
      %p28 = pneg %p22
      %p29 = scmp.eq.s32.totalorder %s13, 1
      %p30 = por %p28, %p29
      %p31 = scmp.ne.s32.totalorder %s23, %s26
      %p32 = scmp.eq.s32.totalorder %s13, 0
      %p33 = por %p31, %p32
      %p34 = scmp.ne.s32.totalorder %s23, %s26
      %p35 = scmp.eq.s32.totalorder %s18, 1
      %p36 = por %p34, %p35
      %p37 = scmp.ne.s32.totalorder %s26, %s27
      %p38 = scmp.eq.s32.totalorder %s18, 0
      %p39 = por %p37, %p38
      %p40 = scmp.ne.s32.totalorder %s26, %s27
      %p41 = scmp.eq.s32.totalorder %s19, 1
      %p42 = por %p40, %p41
      %p44 = scmp.ne.s32.totalorder %s27, %s43
      %p45 = scmp.eq.s32.totalorder %s19, 0
      %p46 = por %p44, %p45
      %s47 = ssub.s32 %s13, %s20
      %p48 = scmp.eq.s32.totalorder %s47, 0
      %s50 = sadd.s32 %s49, 1
      %s51 = scalar_select %p48, %s49, %s50
      %p54 = pneg %p48
      %p55 = scmp.eq.s32.totalorder %s13, 1
      %p56 = por %p54, %p55
      %p57 = scmp.ne.s32.totalorder %s49, %s52
      %p58 = scmp.eq.s32.totalorder %s13, 0
      %p59 = por %p57, %p58
      %p60 = scmp.ne.s32.totalorder %s49, %s52
      %p61 = scmp.eq.s32.totalorder %s18, 1
      %p62 = por %p60, %p61
      %p63 = scmp.ne.s32.totalorder %s52, %s53
      %p64 = scmp.eq.s32.totalorder %s18, 0
      %p65 = por %p63, %p64
      %p66 = scmp.ne.s32.totalorder %s52, %s53
      %p67 = scmp.eq.s32.totalorder %s19, 1
      %p68 = por %p66, %p67
      %p70 = scmp.ne.s32.totalorder %s53, %s69
      %p71 = scmp.eq.s32.totalorder %s19, 0
      %p72 = por %p70, %p71
      %p73 = scmp.le.s32.totalorder 1, %s13
      %p74 = scmp.lt.s32.totalorder %s13, 3
      %p75 = pnand %p73, %p74
      %p76 = pneg %p75
      // Predicated region
      $region9: #{tpu_custom_call.1} parent=5 // pred_check
        _
      $region10: #{tpu_custom_call.1} parent=5 // pred_check_branch
        %78 = sbr.rel (%p75) target = $region12
      $region11: #{tpu_custom_call.1} parent=5 // pred_region
        %s79 = ssub.s32 %s13, 1
      $region12: #{tpu_custom_call.1} parent=5 // pred_fallthru
        _
      %p80 = scmp.lt.s32.totalorder %s13, 2
      // Predicated region
      $region13: #{tpu_custom_call.1} parent=5 // pred_check
        %p81 = pneg %p80
      $region14: #{tpu_custom_call.1} parent=5 // pred_check_branch
        %83 = sbr.rel (%p81) target = $region16
      $region15: #{tpu_custom_call.1} parent=5 // pred_region
        // Predicated region
        $region17: #{tpu_custom_call.1} parent=15 // pred_check
          %p84 = pneg %p33
        $region18: #{tpu_custom_call.1} parent=15 // pred_check_branch
          %86 = sbr.rel (%p84) target = $region20
        $region19: #{tpu_custom_call.1} parent=15 // pred_region
          %s87 = sand.u32 %s23, 1
          %s88 = scalar_lea.sflag [#allocation3], %s87
          %s89 = sand.u32 %s23, 1
          %s90 = smul.addr %s89, 8
          %s91 = scalar_lea.vmem [#allocation2], %s90
          %s93 = ssub.s32 128, 128
          %94 = vsyncadd %s88, %s93
          %s95 = smul.addr %s13, 128
          %s96 = scalar_lea.hbm %s0, %s95
          %s98 = sshll.u32 %s91, 4
          %s99 = int_to_ptr.vmem [resolvable:$true] %s98
          %101 = dma.hbm_to_vmem [thread:$0]  %s96, 128, %s99, %s88
        $region20: #{tpu_custom_call.1} parent=15 // pred_fallthru
          _
      $region16: #{tpu_custom_call.1} parent=5 // pred_fallthru
        _
      %p102 = scmp.le.s32.totalorder 1, %s13
      %p103 = scmp.lt.s32.totalorder %s13, 3
      %p104 = pnand %p102, %p103
      %p105 = pneg %p104
      // Predicated region
      $region21: #{tpu_custom_call.1} parent=5 // pred_check
        _
      $region22: #{tpu_custom_call.1} parent=5 // pred_check_branch
        %107 = sbr.rel (%p104) target = $region24
      $region23: #{tpu_custom_call.1} parent=5 // pred_region
        %s108 = ssub.s32 %s13, 1
        %s109 = sand.u32 %s26, 1
        %s110 = scalar_lea.sflag [#allocation3], %s109
        %s111 = sand.u32 %s26, 1
        %s112 = smul.addr %s111, 8
        %s113 = scalar_lea.vmem [#allocation2], %s112
        // Predicated region
        $region25: #{tpu_custom_call.1} parent=23 // pred_check
          %p114 = pneg %p39
        $region26: #{tpu_custom_call.1} parent=23 // pred_check_branch
          %116 = sbr.rel (%p114) target = $region28
        $region27: #{tpu_custom_call.1} parent=23 // pred_region
          %117 = dma.done %s110, 128
        $region28: #{tpu_custom_call.1} parent=23 // pred_fallthru
          _
        %s118 = sand.u32 %s26, 1
        %s119 = scalar_lea.sflag [#allocation3], %s118
        %s120 = sand.u32 %s26, 1
        %s121 = smul.addr %s120, 8
        %s122 = scalar_lea.vmem [#allocation2], %s121
        %p123 = pneg %p39
        %p124 = pneg %p36
        %p125 = pneg %p65
        %p126 = pneg %p62
        %s127 = sand.u32 %s52, 1
        %s128 = scalar_lea.sflag [#allocation4], %s127
        %s129 = sand.u32 %s52, 1
        %s130 = smul.addr %s129, 8
        %s131 = scalar_lea.vmem [#allocation5], %s130
        %v132 = vld [vmem:[%s113] sm:$0xff]
        %133 = vmax.xlane.f32.xlu0 %v132
        %v134 = vpop.xlane.xlu0 %133
        %v135 = vsub.f32 %v132, %v134
        %v136 = vmul.f32 %v135, 1.442695
        %v137 = vpow.pop %v136
        %138 = vadd.xlane.f32.xlu0 %v137
        %v139 = vpop.xlane.xlu0 %138
        %v140 = vmul.f32 %v137, 0.60653067
        %v141 = vmul.f32 %v137, -0.39346933
        %v142 = vadd.f32 %v139, %v141
        %v143 = vrcp.pop %v142
        %v144 = vmul.f32 %v140, %v143
        %145 = vst [vmem:[%s131] sm:$0xff] %v144
        %s146 = sand.u32 %s52, 1
        %s147 = scalar_lea.sflag [#allocation4], %s146
        %s148 = sand.u32 %s52, 1
        %s149 = smul.addr %s148, 8
        %s150 = scalar_lea.vmem [#allocation5], %s149
        // Predicated region
        $region29: #{tpu_custom_call.1} parent=23 // pred_check
          %p151 = pneg %p62
        $region30: #{tpu_custom_call.1} parent=23 // pred_check_branch
          %153 = sbr.rel (%p151) target = $region32
        $region31: #{tpu_custom_call.1} parent=23 // pred_region
          %s155 = ssub.s32 128, 128
          %156 = vsyncadd %s147, %s155
          %s157 = smul.addr %s18, 128
          %s158 = scalar_lea.hbm %s1, %s157
          %s160 = sshll.u32 %s150, 4
          %s161 = int_to_ptr.vmem [resolvable:$true] %s160
          %163 = dma.vmem_to_hbm [thread:$0]  %s161, 128, %s158, %s147
        $region32: #{tpu_custom_call.1} parent=23 // pred_fallthru
          _
      $region24: #{tpu_custom_call.1} parent=5 // pred_fallthru
        _
      %p164 = scmp.le.s32.totalorder 2, %s13
      // Predicated region
      $region33: #{tpu_custom_call.1} parent=5 // pred_check
        %p165 = pneg %p164
      $region34: #{tpu_custom_call.1} parent=5 // pred_check_branch
        %167 = sbr.rel (%p165) target = $region36
      $region35: #{tpu_custom_call.1} parent=5 // pred_region
        %s168 = ssub.s32 %s13, 2
        // Predicated region
        $region37: #{tpu_custom_call.1} parent=35 // pred_check
          %p169 = pneg %p68
        $region38: #{tpu_custom_call.1} parent=35 // pred_check_branch
          %171 = sbr.rel (%p169) target = $region40
        $region39: #{tpu_custom_call.1} parent=35 // pred_region
          %s172 = sand.u32 %s53, 1
          %s173 = scalar_lea.sflag [#allocation4], %s172
          %s174 = sand.u32 %s53, 1
          %s175 = smul.addr %s174, 8
          %s176 = scalar_lea.vmem [#allocation5], %s175
          %177 = dma.done %s173, 128
        $region40: #{tpu_custom_call.1} parent=35 // pred_fallthru
          _
      $region36: #{tpu_custom_call.1} parent=5 // pred_fallthru
        _
    $region6: #{tpu_custom_call.1} parent=1 // loop_footer
      %s17 = sadd.s32 1, %s13
    $region7: #{tpu_custom_call.1} parent=1 // loop_footer_branch
      %12 = sbr.rel target = $region3
    $region8: #{tpu_custom_call.1} parent=1 // loop_exit
      _
    %178 = vsyncpa [#allocation3], 1
    %s179 = scalar_lea.sflag [#allocation3], 1
    %180 = vsyncpa %s179, 1
    %181 = vsyncpa [#allocation4], 1
    %s182 = scalar_lea.sflag [#allocation4], 1
    %183 = vsyncpa %s182, 1

</llo_original>
